<compile_context>
chip_gen: v7x
topology: tpu7x:2x2x1
jax: 0.10.0
libtpu: 0.0.40
codegen_flags: <defaults>
</compile_context>

<pallas_src>
import functools

import jax
import jax.numpy as jnp
from jax import lax
from jax.experimental import pallas as pl
from jax.experimental.pallas import tpu as pltpu


# ----------------------------------------------------------------------------
# Pallas kernel: TB batch elements per grid step, lane-folded (TB*H, W*C).
# ----------------------------------------------------------------------------
def sep_up_kernel(x2_ref, x1_ref, mh_ref, kw_ref, mprev_ref, mnext_ref,
                  a1_ref, s1_ref, b1_ref, a2_ref, s2_ref, b2_ref, out_ref):
    # x2_ref   : (TB*H,  W*C2)       skip connection, lane-folded NHWC, f32
    # x1_ref   : (TB*H1, W1*C1)      low-res input, lane-folded NHWC, f32
    # mh_ref   : (TB*H,  TB*H1)      kron(I_TB, bilinear row interp(+pad)), f32
    # kw_ref   : (W1*C1, W*C1)       bilinear col interp(+pad), lane-folded, f32
    # mprev_ref: (TB*H, 1)           0 at top row of each image, else 1 (f32)
    # mnext_ref: (TB*H, 1)           0 at bottom row of each image, else 1 (f32)
    # a1_ref   : (3*W*Cin,  W*Cmid)  dw3x3+pw1x1 folded, ky taps K-stacked, bf16
    # s1_ref   : (1, W*Cmid)         BN scale (f32, kept out of the bf16 weights)
    # b1_ref   : (1, W*Cmid)         folded bias (f32)
    # a2_ref   : (3*W*Cmid, W*Cout)  bf16
    # s2_ref, b2_ref : (1, W*Cout)   f32
    # out_ref  : (TB*H, W*Cout)      f32
    rows = x2_ref.shape[0]

    # ---- fused bilinear 2x upsample (align_corners=True) + pad: two matmuls ----
    x1w = jnp.dot(x1_ref[...], kw_ref[...], preferred_element_type=jnp.float32)
    x1up = jnp.dot(mh_ref[...], x1w, preferred_element_type=jnp.float32)

    # ---- channel concat on the lane axis (A1 rows were permuted to match) ----
    x = jnp.concatenate([x2_ref[...], x1up], axis=-1)          # (rows, W*Cin) f32

    m_prev = mprev_ref[...]                                    # (rows, 1) f32
    m_next = mnext_ref[...]

    def ds_block(v, a_ref, s_ref, b_ref):
        # depthwise 3x3 -> pointwise 1x1 -> BN(eval) -> ReLU.  Horizontal taps,
        # per-channel depthwise weights and the 1x1 conv are folded into a_ref;
        # the 3 vertical taps are fused into ONE matmul via a lane concat of
        # [v[h-1], v[h], v[h+1]] (single bf16 cast of the whole slab).
        v_prev = pltpu.roll(v, 1, 0) * m_prev                  # zero top border
        v_next = pltpu.roll(v, rows - 1, 0) * m_next           # zero bottom border
        vcat = jnp.concatenate([v_prev, v, v_next], axis=-1).astype(jnp.bfloat16)
        acc = jnp.dot(vcat, a_ref[...], preferred_element_type=jnp.float32)
        return jnp.maximum(acc * s_ref[...] + b_ref[...], 0.0)  # f32 BN + ReLU

    y = ds_block(x, a1_ref, s1_ref, b1_ref)                    # (rows, W*Cmid)
    z = ds_block(y, a2_ref, s2_ref, b2_ref)                    # (rows, W*Cout)
    out_ref[...] = z.astype(out_ref.dtype)                     # lane-dense store


def _const_spec(shape):
    nd = len(shape)
    return pl.BlockSpec(shape, lambda g, _z=(0,) * nd: _z)


def sep_up_pallas(x2f, x1f, kp):
    """x2f: (N, H, W*C2), x1f: (N, H1, W1*C1).  Returns (N, H, W*Cout) f32."""
    N, H, WC2 = x2f.shape
    _, H1, WC1 = x1f.shape
    WCout = kp['a2'].shape[-1]
    tb = kp['tb']
    assert N % tb == 0, (N, tb)
    G = N // tb
    rows, rows1 = tb * H, tb * H1

    # Stack TB batch elements along sublanes (pure view reshapes, no copies).
    x2s = x2f.reshape(G, rows, WC2)
    x1s = x1f.reshape(G, rows1, WC1)

    in_specs = [
        pl.BlockSpec((None, rows, WC2), lambda g: (g, 0, 0)),
        pl.BlockSpec((None, rows1, WC1), lambda g: (g, 0, 0)),
        _const_spec(kp['mh'].shape),
        _const_spec(kp['kw'].shape),
        _const_spec(kp['m_prev'].shape),
        _const_spec(kp['m_next'].shape),
        _const_spec(kp['a1'].shape),
        _const_spec(kp['s1'].shape),
        _const_spec(kp['b1'].shape),
        _const_spec(kp['a2'].shape),
        _const_spec(kp['s2'].shape),
        _const_spec(kp['b2'].shape),
    ]
    outf = pl.pallas_call(
        sep_up_kernel,
        out_shape=jax.ShapeDtypeStruct((G, rows, WCout), jnp.float32),
        grid=(G,),
        in_specs=in_specs,
        out_specs=pl.BlockSpec((None, rows, WCout), lambda g: (g, 0, 0)),
        compiler_params=pltpu.CompilerParams(
            # Serial loop on v5e/v6e (single TensorCore); shards the batch
            # tiles across v7x's two TensorCores when G > 1.
            dimension_semantics=("parallel",)),
    )(x2s, x1s, kp['mh'], kp['kw'], kp['m_prev'], kp['m_next'],
      kp['a1'], kp['s1'], kp['b1'], kp['a2'], kp['s2'], kp['b2'])
    return outf.reshape(N, H, WCout)


def sep_up_forward(x1, x2, kp):
    """SepUp.forward (bilinear=True).  x1, x2 NCHW; returns NCHW."""
    # TODO(synk): keep the surrounding model NHWC so these boundary transposes
    # (which dominate end-to-end time at these sizes) disappear entirely.
    N, C1, H1, W1 = x1.shape
    _, C2, H2, W2 = x2.shape
    x1f = jnp.transpose(x1, (0, 2, 3, 1)).reshape(N, H1, W1 * C1)
    x2f = jnp.transpose(x2, (0, 2, 3, 1)).reshape(N, H2, W2 * C2)
    outf = sep_up_pallas(x2f, x1f, kp)
    Cout = kp['a2'].shape[-1] // W2
    return jnp.transpose(outf.reshape(N, H2, W2, Cout), (0, 3, 1, 2))


# ----------------------------------------------------------------------------
# Host-side folding of the module parameters into lane-folded matrices.
# ----------------------------------------------------------------------------
def _interp_matrix(n_in, n_out, dtype=jnp.float32):
    """align_corners=True bilinear interpolation matrix (n_out, n_in)."""
    if n_in == 1:
        return jnp.ones((n_out, 1), dtype)
    src = jnp.arange(n_out, dtype=dtype) * (n_in - 1) / (n_out - 1)
    lo = jnp.clip(jnp.floor(src).astype(jnp.int32), 0, n_in - 2)
    frac = src - lo.astype(dtype)
    M = jnp.zeros((n_out, n_in), dtype)
    M = M.at[jnp.arange(n_out), lo].set(1.0 - frac)
    M = M.at[jnp.arange(n_out), lo + 1].add(frac)
    return M


def _fold_block(dw_w, dw_b, pw_w, pw_b, gamma, beta, mean, var, W, eps=1e-5):
    """Fold (depthwise 3x3 + bias) -> (pointwise 1x1 + bias) -> BN(eval) into
      A : (3, W*C, W*Co)  dw+pw weights per vertical tap ky (NO BN scale)
      s : (1, W*Co)       BN scale row, applied post-matmul in f32
      b : (1, W*Co)       folded bias row (conv bias through BN), f32
    acting on the lane-folded feature space  feat[w*C + c]."""
    C = dw_w.shape[0]
    Co = pw_w.shape[0]
    pw = pw_w.reshape(Co, C).T                               # (C, Co)
    s = gamma / jnp.sqrt(var + eps)                          # BN scale (Co,)
    t = beta - mean * s                                      # BN shift (Co,)

    A = []
    for ky in range(3):
        a_ky = jnp.zeros((W * C, W * Co), jnp.float32)
        for kx in range(3):
            # out[w'] reads input column w' + kx - 1  ->  band eye(W, k=1-kx)
            T = jnp.eye(W, k=1 - kx, dtype=jnp.float32)      # (W, W)
            blk = dw_w[:, 0, ky, kx][:, None] * pw           # (C, Co)
            a_ky = a_ky + jnp.kron(T, blk)
        A.append(a_ky)
    A = jnp.stack(A)                                         # (3, W*C, W*Co)
    s_row = jnp.tile(s, W)[None, :]                          # (1, W*Co)  f32
    b_row = jnp.tile((dw_b @ pw + pw_b) * s + t, W)[None, :]  # (1, W*Co)  f32
    return A, s_row, b_row


def pack_for_kernel(raw, x1_shape, x2_shape, tb=None):
    N, C1, H1, W1 = x1_shape
    _, C2, H2, W2 = x2_shape
    Cin = C1 + C2
    Cmid = raw['pw1_w'].shape[0]
    Cout = raw['pw2_w'].shape[0]

    # Lane-density guard (review): the folded layout is only exactly lane-dense
    # when the folded feature widths are multiples of 128.
    assert (W2 * Cin) % 128 == 0 and (W2 * Cout) % 128 == 0, (W2, Cin, Cout)

    # Batch tile per grid step: largest divisor of N that is <= 8.
    if tb is None:
        tb = max(d for d in range(1, min(N, 8) + 1) if N % d == 0)
    assert N % tb == 0

    # --- upsample(+pad) matrices in the folded layout ---
    diffY = H2 - 2 * H1
    diffX = W2 - 2 * W1
    mh_up = _interp_matrix(H1, 2 * H1)                       # (2H1, H1)
    mw_up = _interp_matrix(W1, 2 * W1)                       # (2W1, W1)
    mh = jnp.zeros((H2, H1), jnp.float32).at[diffY // 2:diffY // 2 + 2 * H1].set(mh_up)
    mw = jnp.zeros((W2, W1), jnp.float32).at[diffX // 2:diffX // 2 + 2 * W1].set(mw_up)
    # Batch-block-diagonal row interp: TB stacked images interpolate independently.
    mh = jnp.kron(jnp.eye(tb, dtype=jnp.float32), mh)        # (tb*H2, tb*H1)
    # folded W-interp: kw[wi*C1 + c, wo*C1 + c] = mw[wo, wi]
    kw = jnp.kron(mw.T, jnp.eye(C1, dtype=jnp.float32))      # (W1*C1, W2*C1)

    # Vertical-shift border masks for the batch-stacked slab.
    ridx = jnp.arange(tb * H2) % H2
    m_prev = (ridx != 0).astype(jnp.float32)[:, None]        # (tb*H2, 1)
    m_next = (ridx != H2 - 1).astype(jnp.float32)[:, None]

    A1, s1, b1 = _fold_block(raw['dw1_w'], raw['dw1_b'], raw['pw1_w'], raw['pw1_b'],
                             raw['bn1_g'], raw['bn1_b'], raw['bn1_m'], raw['bn1_v'], W2)
    A2, s2, b2 = _fold_block(raw['dw2_w'], raw['dw2_b'], raw['pw2_w'], raw['pw2_b'],
                             raw['bn2_g'], raw['bn2_b'], raw['bn2_m'], raw['bn2_v'], W2)

    # Permute A1 rows from the interleaved concat layout (w*Cin + c) to the
    # grouped layout used in the kernel:  [ all x2 features | all x1 features ].
    w = jnp.arange(W2)
    perm_x2 = (w[:, None] * Cin + jnp.arange(C2)[None, :]).reshape(-1)
    perm_x1 = (w[:, None] * Cin + C2 + jnp.arange(C1)[None, :]).reshape(-1)
    perm = jnp.concatenate([perm_x2, perm_x1])
    A1 = A1[:, perm, :]

    # K-stack the 3 vertical taps -> one MXU operand per block (matches the
    # in-kernel lane concat order [v_prev | v | v_next]).
    A1 = A1.reshape(3 * W2 * Cin, W2 * Cmid)
    A2 = A2.reshape(3 * W2 * Cmid, W2 * Cout)

    return dict(tb=tb, mh=mh, kw=kw, m_prev=m_prev, m_next=m_next,
                a1=A1.astype(jnp.bfloat16), s1=s1, b1=b1,    # bf16 MXU operands,
                a2=A2.astype(jnp.bfloat16), s2=s2, b2=b2)    # f32 scale/bias


# ----------------------------------------------------------------------------
# Pure-JAX reference (lax.conv, f32 HIGHEST precision) for correctness check.
# ----------------------------------------------------------------------------
def bilinear_upsample_x2(x):
    # x: (N, C, H, W), align_corners=True, scale_factor=2
    N, C, H, W = x.shape
    Mh = _interp_matrix(H, 2 * H, x.dtype)
    Mw = _interp_matrix(W, 2 * W, x.dtype)
    return jnp.einsum('oh,nchw,pw->ncop', Mh, x, Mw,
                      precision=lax.Precision.HIGHEST)


def _conv_ref(x, w, b, groups, padding):
    out = lax.conv_general_dilated(
        x, w, window_strides=(1, 1), padding=[(padding, padding)] * 2,
        dimension_numbers=('NCHW', 'OIHW', 'NCHW'),
        feature_group_count=groups, precision=lax.Precision.HIGHEST)
    return out + b[None, :, None, None]


def sep_up_reference(x1, x2, raw):
    x1u = bilinear_upsample_x2(x1)
    diffY = x2.shape[2] - x1u.shape[2]
    diffX = x2.shape[3] - x1u.shape[3]
    x1p = jnp.pad(x1u, ((0, 0), (0, 0),
                        (diffY // 2, diffY - diffY // 2),
                        (diffX // 2, diffX - diffX // 2)))
    x = jnp.concatenate([x2, x1p], axis=1)
    eps = 1e-5

    def block(x, dw_w, dw_b, pw_w, pw_b, g, bta, mean, var):
        x = _conv_ref(x, dw_w, dw_b, groups=dw_w.shape[0], padding=1)
        x = _conv_ref(x, pw_w, pw_b, groups=1, padding=0)
        x = (x - mean[None, :, None, None]) / jnp.sqrt(var + eps)[None, :, None, None]
        x = x * g[None, :, None, None] + bta[None, :, None, None]
        return jnp.maximum(x, 0.0)

    x = block(x, raw['dw1_w'], raw['dw1_b'], raw['pw1_w'], raw['pw1_b'],
              raw['bn1_g'], raw['bn1_b'], raw['bn1_m'], raw['bn1_v'])
    x = block(x, raw['dw2_w'], raw['dw2_b'], raw['pw2_w'], raw['pw2_b'],
              raw['bn2_g'], raw['bn2_b'], raw['bn2_m'], raw['bn2_v'])
    return x


# ----------------------------------------------------------------------------
# Deterministic parameter construction (PyTorch shapes).
# ----------------------------------------------------------------------------
def make_params(key, in_channels, out_channels):
    cmid = in_channels // 2
    ks = jax.random.split(key, 16)
    n = lambda k, shape, s=0.1: s * jax.random.normal(k, shape, jnp.float32)
    return dict(
        dw1_w=n(ks[0], (in_channels, 1, 3, 3)),
        dw1_b=n(ks[1], (in_channels,)),
        pw1_w=n(ks[2], (cmid, in_channels, 1, 1)),
        pw1_b=n(ks[3], (cmid,)),
        bn1_g=1.0 + n(ks[4], (cmid,)),
        bn1_b=n(ks[5], (cmid,)),
        bn1_m=n(ks[6], (cmid,)),
        bn1_v=0.5 + jnp.abs(n(ks[7], (cmid,), 0.5)),
        dw2_w=n(ks[8], (cmid, 1, 3, 3)),
        dw2_b=n(ks[9], (cmid,)),
        pw2_w=n(ks[10], (out_channels, cmid, 1, 1)),
        pw2_b=n(ks[11], (out_channels,)),
        bn2_g=1.0 + n(ks[12], (out_channels,)),
        bn2_b=n(ks[13], (out_channels,)),
        bn2_m=n(ks[14], (out_channels,)),
        bn2_v=0.5 + jnp.abs(n(ks[15], (out_channels,), 0.5)),
    )


if __name__ == "__main__":
    in_channels, out_channels = 8, 8     # concat channels = in_channels
    N, H2, W2 = 2, 16, 16                # x2 spatial; x1 is half resolution
    # (W2 * in_channels = 128 -> fully lane-dense folded layout)

    key = jax.random.PRNGKey(0)
    k1, k2, kw_ = jax.random.split(key, 3)
    x1 = jax.random.normal(k1, (N, in_channels // 2, H2 // 2, W2 // 2), jnp.float32)
    x2 = jax.random.normal(k2, (N, in_channels // 2, H2, W2), jnp.float32)

    raw = make_params(kw_, in_channels, out_channels)
    kp = pack_for_kernel(raw, x1.shape, x2.shape)

    fwd = jax.jit(functools.partial(sep_up_forward, kp=kp))
    out = jax.block_until_ready(fwd(x1, x2))

    ref = sep_up_reference(x1, x2, raw)
    assert out.shape == (N, out_channels, H2, W2), out.shape
    # Kernel uses bf16 MXU operands (f32 accumulation, f32 BN scale/bias);
    # reference is f32 HIGHEST.
    err = float(jnp.max(jnp.abs(out - ref)))
    assert jnp.allclose(out, ref, rtol=1e-2, atol=1e-2), err

    print("KERNEL_OK")
</pallas_src>

<mosaic_0001>
module attributes {stable_mosaic.version = 11 : i64} {
  func.func @sep_up_kernel(%arg0: i32, %arg1: memref<1x32x64xf32, #tpu.memory_space<vmem>>, %arg2: memref<1x16x32xf32, #tpu.memory_space<vmem>>, %arg3: memref<32x16xf32, #tpu.memory_space<vmem>>, %arg4: memref<32x64xf32, #tpu.memory_space<vmem>>, %arg5: memref<32x1xf32, #tpu.memory_space<vmem>>, %arg6: memref<32x1xf32, #tpu.memory_space<vmem>>, %arg7: memref<384x64xbf16, #tpu.memory_space<vmem>>, %arg8: memref<1x64xf32, #tpu.memory_space<vmem>>, %arg9: memref<1x64xf32, #tpu.memory_space<vmem>>, %arg10: memref<192x128xbf16, #tpu.memory_space<vmem>>, %arg11: memref<1x128xf32, #tpu.memory_space<vmem>>, %arg12: memref<1x128xf32, #tpu.memory_space<vmem>>, %arg13: memref<1x32x128xf32, #tpu.memory_space<vmem>>) attributes {dimension_semantics = [#tpu.dimension_semantics<parallel>], iteration_bounds = array<i64: 1>, scalar_prefetch = 0 : i64, scratch_operands = 0 : i64, tpu.core_type = #tpu.core_type<tc>, window_params = [{transform_indices = @transform_0, window_bounds = array<i64: 1, 32, 64>}, {transform_indices = @transform_1, window_bounds = array<i64: 1, 16, 32>}, {pipeline_mode = #tpu.pipeline_mode<synchronous>, transform_indices = @transform_2, window_bounds = array<i64: 32, 16>}, {pipeline_mode = #tpu.pipeline_mode<synchronous>, transform_indices = @transform_3, window_bounds = array<i64: 32, 64>}, {pipeline_mode = #tpu.pipeline_mode<synchronous>, transform_indices = @transform_4, window_bounds = array<i64: 32, 1>}, {pipeline_mode = #tpu.pipeline_mode<synchronous>, transform_indices = @transform_5, window_bounds = array<i64: 32, 1>}, {pipeline_mode = #tpu.pipeline_mode<synchronous>, transform_indices = @transform_6, window_bounds = array<i64: 384, 64>}, {pipeline_mode = #tpu.pipeline_mode<synchronous>, transform_indices = @transform_7, window_bounds = array<i64: 1, 64>}, {pipeline_mode = #tpu.pipeline_mode<synchronous>, transform_indices = @transform_8, window_bounds = array<i64: 1, 64>}, {pipeline_mode = #tpu.pipeline_mode<synchronous>, transform_indices = @transform_9, window_bounds = array<i64: 192, 128>}, {pipeline_mode = #tpu.pipeline_mode<synchronous>, transform_indices = @transform_10, window_bounds = array<i64: 1, 128>}, {pipeline_mode = #tpu.pipeline_mode<synchronous>, transform_indices = @transform_11, window_bounds = array<i64: 1, 128>}, {transform_indices = @transform_12, window_bounds = array<i64: 1, 32, 128>}]} {
    %c0 = arith.constant 0 : index
    %c0_0 = arith.constant 0 : index
    %c0_1 = arith.constant 0 : index
    %0 = vector.load %arg2[%c0, %c0_0, %c0_1] : memref<1x16x32xf32, #tpu.memory_space<vmem>>, vector<1x16x32xf32>
    %1 = vector.shape_cast %0 : vector<1x16x32xf32> to vector<16x32xf32>
    %c0_2 = arith.constant 0 : index
    %c0_3 = arith.constant 0 : index
    %2 = vector.load %arg4[%c0_2, %c0_3] : memref<32x64xf32, #tpu.memory_space<vmem>>, vector<32x64xf32>
    %cst = arith.constant dense<0.000000e+00> : vector<16x64xf32>
    %3 = tpu.matmul %1, %2, %cst {dimension_numbers = #tpu.dot_dimension_numbers<[1], [0], [0], [1], [0, 0, 1, 1], [], []>} : vector<16x32xf32>, vector<32x64xf32>, vector<16x64xf32> -> vector<16x64xf32>
    %c0_4 = arith.constant 0 : index
    %c0_5 = arith.constant 0 : index
    %4 = vector.load %arg3[%c0_4, %c0_5] : memref<32x16xf32, #tpu.memory_space<vmem>>, vector<32x16xf32>
    %cst_6 = arith.constant dense<0.000000e+00> : vector<32x64xf32>
    %5 = tpu.matmul %4, %3, %cst_6 {dimension_numbers = #tpu.dot_dimension_numbers<[1], [0], [0], [1], [0, 0, 1, 1], [], []>} : vector<32x16xf32>, vector<16x64xf32>, vector<32x64xf32> -> vector<32x64xf32>
    %c0_7 = arith.constant 0 : index
    %c0_8 = arith.constant 0 : index
    %c0_9 = arith.constant 0 : index
    %6 = vector.load %arg1[%c0_7, %c0_8, %c0_9] : memref<1x32x64xf32, #tpu.memory_space<vmem>>, vector<1x32x64xf32>
    %7 = vector.shape_cast %6 : vector<1x32x64xf32> to vector<32x64xf32>
    %8 = tpu.concatenate %7, %5 in 1 : vector<32x64xf32>, vector<32x64xf32> -> vector<32x128xf32>
    %c0_10 = arith.constant 0 : index
    %c0_11 = arith.constant 0 : index
    %9 = vector.load %arg5[%c0_10, %c0_11] : memref<32x1xf32, #tpu.memory_space<vmem>>, vector<32x1xf32>
    %c0_12 = arith.constant 0 : index
    %c0_13 = arith.constant 0 : index
    %10 = vector.load %arg6[%c0_12, %c0_13] : memref<32x1xf32, #tpu.memory_space<vmem>>, vector<32x1xf32>
    %c1_i32 = arith.constant 1 : i32
    %11 = tpu.dynamic_rotate %8 by %c1_i32 dim 0 : vector<32x128xf32>, i32 -> vector<32x128xf32>
    %12 = vector.broadcast %9 : vector<32x1xf32> to vector<32x128xf32>
    %13 = arith.mulf %11, %12 : vector<32x128xf32>
    %c31_i32 = arith.constant 31 : i32
    %14 = tpu.dynamic_rotate %8 by %c31_i32 dim 0 : vector<32x128xf32>, i32 -> vector<32x128xf32>
    %15 = vector.broadcast %10 : vector<32x1xf32> to vector<32x128xf32>
    %16 = arith.mulf %14, %15 : vector<32x128xf32>
    %17 = tpu.concatenate %13, %8, %16 in 1 : vector<32x128xf32>, vector<32x128xf32>, vector<32x128xf32> -> vector<32x384xf32>
    %18 = arith.truncf %17 : vector<32x384xf32> to vector<32x384xbf16>
    %c0_14 = arith.constant 0 : index
    %c0_15 = arith.constant 0 : index
    %19 = vector.load %arg7[%c0_14, %c0_15] : memref<384x64xbf16, #tpu.memory_space<vmem>>, vector<384x64xbf16>
    %cst_16 = arith.constant dense<0.000000e+00> : vector<32x64xf32>
    %20 = tpu.matmul %18, %19, %cst_16 {dimension_numbers = #tpu.dot_dimension_numbers<[1], [0], [0], [1], [0, 0, 1, 1], [], []>} : vector<32x384xbf16>, vector<384x64xbf16>, vector<32x64xf32> -> vector<32x64xf32>
    %c0_17 = arith.constant 0 : index
    %c0_18 = arith.constant 0 : index
    %21 = vector.load %arg8[%c0_17, %c0_18] : memref<1x64xf32, #tpu.memory_space<vmem>>, vector<1x64xf32>
    %22 = vector.broadcast %21 : vector<1x64xf32> to vector<32x64xf32>
    %23 = arith.mulf %20, %22 : vector<32x64xf32>
    %c0_19 = arith.constant 0 : index
    %c0_20 = arith.constant 0 : index
    %24 = vector.load %arg9[%c0_19, %c0_20] : memref<1x64xf32, #tpu.memory_space<vmem>>, vector<1x64xf32>
    %25 = vector.broadcast %24 : vector<1x64xf32> to vector<32x64xf32>
    %26 = arith.addf %23, %25 : vector<32x64xf32>
    %cst_21 = arith.constant 0.000000e+00 : f32
    %27 = vector.broadcast %cst_21 : f32 to vector<32x64xf32>
    %28 = arith.maximumf %26, %27 : vector<32x64xf32>
    %c1_i32_22 = arith.constant 1 : i32
    %29 = tpu.dynamic_rotate %28 by %c1_i32_22 dim 0 : vector<32x64xf32>, i32 -> vector<32x64xf32>
    %30 = vector.broadcast %9 : vector<32x1xf32> to vector<32x64xf32>
    %31 = arith.mulf %29, %30 : vector<32x64xf32>
    %c31_i32_23 = arith.constant 31 : i32
    %32 = tpu.dynamic_rotate %28 by %c31_i32_23 dim 0 : vector<32x64xf32>, i32 -> vector<32x64xf32>
    %33 = vector.broadcast %10 : vector<32x1xf32> to vector<32x64xf32>
    %34 = arith.mulf %32, %33 : vector<32x64xf32>
    %35 = tpu.concatenate %31, %28, %34 in 1 : vector<32x64xf32>, vector<32x64xf32>, vector<32x64xf32> -> vector<32x192xf32>
    %36 = arith.truncf %35 : vector<32x192xf32> to vector<32x192xbf16>
    %c0_24 = arith.constant 0 : index
    %c0_25 = arith.constant 0 : index
    %37 = vector.load %arg10[%c0_24, %c0_25] : memref<192x128xbf16, #tpu.memory_space<vmem>>, vector<192x128xbf16>
    %cst_26 = arith.constant dense<0.000000e+00> : vector<32x128xf32>
    %38 = tpu.matmul %36, %37, %cst_26 {dimension_numbers = #tpu.dot_dimension_numbers<[1], [0], [0], [1], [0, 0, 1, 1], [], []>} : vector<32x192xbf16>, vector<192x128xbf16>, vector<32x128xf32> -> vector<32x128xf32>
    %c0_27 = arith.constant 0 : index
    %c0_28 = arith.constant 0 : index
    %39 = vector.load %arg11[%c0_27, %c0_28] : memref<1x128xf32, #tpu.memory_space<vmem>>, vector<1x128xf32>
    %40 = vector.broadcast %39 : vector<1x128xf32> to vector<32x128xf32>
    %41 = arith.mulf %38, %40 : vector<32x128xf32>
    %c0_29 = arith.constant 0 : index
    %c0_30 = arith.constant 0 : index
    %42 = vector.load %arg12[%c0_29, %c0_30] : memref<1x128xf32, #tpu.memory_space<vmem>>, vector<1x128xf32>
    %43 = vector.broadcast %42 : vector<1x128xf32> to vector<32x128xf32>
    %44 = arith.addf %41, %43 : vector<32x128xf32>
    %cst_31 = arith.constant 0.000000e+00 : f32
    %45 = vector.broadcast %cst_31 : f32 to vector<32x128xf32>
    %46 = arith.maximumf %44, %45 : vector<32x128xf32>
    %c0_32 = arith.constant 0 : index
    %c0_33 = arith.constant 0 : index
    %c0_34 = arith.constant 0 : index
    %47 = vector.load %arg13[%c0_32, %c0_33, %c0_34] : memref<1x32x128xf32, #tpu.memory_space<vmem>>, vector<1x32x128xf32>
    %48 = vector.shape_cast %47 : vector<1x32x128xf32> to vector<32x128xf32>
    %49 = vector.shape_cast %46 : vector<32x128xf32> to vector<1x32x128xf32>
    tpu.vector_store %arg13[%c0_32, %c0_33, %c0_34], %49 {strides = array<i32>} : memref<1x32x128xf32, #tpu.memory_space<vmem>>, vector<1x32x128xf32>,
    return
  }
  func.func @transform_0(%arg0: i32) -> (i32, i32, i32) {
    %c0_i32 = arith.constant 0 : i32
    %c0_i32_0 = arith.constant 0 : i32
    %c0_i32_1 = arith.constant 0 : i32
    return %arg0, %c0_i32, %c0_i32_0 : i32, i32, i32
  }
  func.func @transform_1(%arg0: i32) -> (i32, i32, i32) {
    %c0_i32 = arith.constant 0 : i32
    %c0_i32_0 = arith.constant 0 : i32
    %c0_i32_1 = arith.constant 0 : i32
    return %arg0, %c0_i32, %c0_i32_0 : i32, i32, i32
  }
  func.func @transform_2(%arg0: i32) -> (i32, i32) {
    %c0_i32 = arith.constant 0 : i32
    %c0_i32_0 = arith.constant 0 : i32
    %c0_i32_1 = arith.constant 0 : i32
    return %c0_i32, %c0_i32_0 : i32, i32
  }
  func.func @transform_3(%arg0: i32) -> (i32, i32) {
    %c0_i32 = arith.constant 0 : i32
    %c0_i32_0 = arith.constant 0 : i32
    %c0_i32_1 = arith.constant 0 : i32
    return %c0_i32, %c0_i32_0 : i32, i32
  }
  func.func @transform_4(%arg0: i32) -> (i32, i32) {
    %c0_i32 = arith.constant 0 : i32
    %c0_i32_0 = arith.constant 0 : i32
    %c0_i32_1 = arith.constant 0 : i32
    return %c0_i32, %c0_i32_0 : i32, i32
  }
  func.func @transform_5(%arg0: i32) -> (i32, i32) {
    %c0_i32 = arith.constant 0 : i32
    %c0_i32_0 = arith.constant 0 : i32
    %c0_i32_1 = arith.constant 0 : i32
    return %c0_i32, %c0_i32_0 : i32, i32
  }
  func.func @transform_6(%arg0: i32) -> (i32, i32) {
    %c0_i32 = arith.constant 0 : i32
    %c0_i32_0 = arith.constant 0 : i32
    %c0_i32_1 = arith.constant 0 : i32
    return %c0_i32, %c0_i32_0 : i32, i32
  }
  func.func @transform_7(%arg0: i32) -> (i32, i32) {
    %c0_i32 = arith.constant 0 : i32
    %c0_i32_0 = arith.constant 0 : i32
    %c0_i32_1 = arith.constant 0 : i32
    return %c0_i32, %c0_i32_0 : i32, i32
  }
  func.func @transform_8(%arg0: i32) -> (i32, i32) {
    %c0_i32 = arith.constant 0 : i32
    %c0_i32_0 = arith.constant 0 : i32
    %c0_i32_1 = arith.constant 0 : i32
    return %c0_i32, %c0_i32_0 : i32, i32
  }
  func.func @transform_9(%arg0: i32) -> (i32, i32) {
    %c0_i32 = arith.constant 0 : i32
    %c0_i32_0 = arith.constant 0 : i32
    %c0_i32_1 = arith.constant 0 : i32
    return %c0_i32, %c0_i32_0 : i32, i32
  }
  func.func @transform_10(%arg0: i32) -> (i32, i32) {
    %c0_i32 = arith.constant 0 : i32
    %c0_i32_0 = arith.constant 0 : i32
    %c0_i32_1 = arith.constant 0 : i32
    return %c0_i32, %c0_i32_0 : i32, i32
  }
  func.func @transform_11(%arg0: i32) -> (i32, i32) {
    %c0_i32 = arith.constant 0 : i32
    %c0_i32_0 = arith.constant 0 : i32
    %c0_i32_1 = arith.constant 0 : i32
    return %c0_i32, %c0_i32_0 : i32, i32
  }
  func.func @transform_12(%arg0: i32) -> (i32, i32, i32) {
    %c0_i32 = arith.constant 0 : i32
    %c0_i32_0 = arith.constant 0 : i32
    %c0_i32_1 = arith.constant 0 : i32
    return %arg0, %c0_i32, %c0_i32_0 : i32, i32, i32
  }
}

</mosaic_0001>

<llo_original>
// kernel: sep_up_forward.1
$region0: #{sep_up_forward.1}
  #allocation0 [shape = 'u32[]', space=smem, size = 0x4, offset = 0x4, fixed_abs, tag = 'smem constant byte address 0x4 - core index']
  #allocation1 [shape = 'u32[144,128]{1,0:T(1,128)}', space=vmem, size = 0x12000, scoped, tag = 'internal scratch']
  %s0 = inlined_call_operand.vmem [shape: f32[1,32,64], index: 0, kind: input, shape index: {}]
  %s1 = inlined_call_operand.vmem [shape: f32[1,16,32], index: 1, kind: input, shape index: {}]
  %s2 = inlined_call_operand.vmem [shape: f32[32,16], index: 2, kind: input, shape index: {}]
  %s3 = inlined_call_operand.vmem [shape: f32[32,64], index: 3, kind: input, shape index: {}]
  %s4 = inlined_call_operand.vmem [shape: f32[32,1], index: 4, kind: input, shape index: {}]
  %s5 = inlined_call_operand.vmem [shape: f32[32,1], index: 5, kind: input, shape index: {}]
  %s6 = inlined_call_operand.vmem [shape: bf16[384,64], index: 6, kind: input, shape index: {}]
  %s7 = inlined_call_operand.vmem [shape: f32[1,64], index: 7, kind: input, shape index: {}]
  %s8 = inlined_call_operand.vmem [shape: f32[1,64], index: 8, kind: input, shape index: {}]
  %s9 = inlined_call_operand.vmem [shape: bf16[192,128], index: 9, kind: input, shape index: {}]
  %s10 = inlined_call_operand.vmem [shape: f32[1,128], index: 10, kind: input, shape index: {}]
  %s11 = inlined_call_operand.vmem [shape: f32[1,128], index: 11, kind: input, shape index: {}]
  %s12 = inlined_call_operand.vmem [shape: f32[1,32,128], index: 12, kind: output, shape index: {}]
  %s13 = sld [smem:[#allocation0]]
  $region58: #{sep_up_forward.1} parent=0
    _
  %s15 = ssub.s32 1, %s13
  %s16 = scalar_select 0, %s15, %s13
  // Predicated region
  $region2: #{sep_up_forward.1} parent=0 // pred_check
    _
  $region3: #{sep_up_forward.1} parent=0 // pred_check_branch
    %18 = sbr.rel (0) target = $region5
  $region4: #{sep_up_forward.1} parent=0 // pred_region
    _
  $region5: #{sep_up_forward.1} parent=0 // pred_fallthru
    _
  // Predicated region
  $region6: #{sep_up_forward.1} parent=0 // pred_check
    _
  $region7: #{sep_up_forward.1} parent=0 // pred_check_branch
    %20 = sbr.rel (0) target = $region9
  $region8: #{sep_up_forward.1} parent=0 // pred_region
    _
  $region9: #{sep_up_forward.1} parent=0 // pred_fallthru
    _
  // Predicated region
  $region10: #{sep_up_forward.1} parent=0 // pred_check
    _
  $region11: #{sep_up_forward.1} parent=0 // pred_check_branch
    %22 = sbr.rel (0) target = $region13
  $region12: #{sep_up_forward.1} parent=0 // pred_region
    _
  $region13: #{sep_up_forward.1} parent=0 // pred_fallthru
    _
  // Predicated region
  $region14: #{sep_up_forward.1} parent=0 // pred_check
    _
  $region15: #{sep_up_forward.1} parent=0 // pred_check_branch
    %24 = sbr.rel (0) target = $region17
  $region16: #{sep_up_forward.1} parent=0 // pred_region
    _
  $region17: #{sep_up_forward.1} parent=0 // pred_fallthru
    _
  // Predicated region
  $region18: #{sep_up_forward.1} parent=0 // pred_check
    _
  $region19: #{sep_up_forward.1} parent=0 // pred_check_branch
    %26 = sbr.rel (0) target = $region21
  $region20: #{sep_up_forward.1} parent=0 // pred_region
    _
  $region21: #{sep_up_forward.1} parent=0 // pred_fallthru
    _
  // Predicated region
  $region22: #{sep_up_forward.1} parent=0 // pred_check
    _
  $region23: #{sep_up_forward.1} parent=0 // pred_check_branch
    %28 = sbr.rel (0) target = $region25
  $region24: #{sep_up_forward.1} parent=0 // pred_region
    _
  $region25: #{sep_up_forward.1} parent=0 // pred_fallthru
    _
  // Predicated region
  $region26: #{sep_up_forward.1} parent=0 // pred_check
    _
  $region27: #{sep_up_forward.1} parent=0 // pred_check_branch
    %30 = sbr.rel (0) target = $region29
  $region28: #{sep_up_forward.1} parent=0 // pred_region
    _
  $region29: #{sep_up_forward.1} parent=0 // pred_fallthru
    _
  // Predicated region
  $region30: #{sep_up_forward.1} parent=0 // pred_check
    _
  $region31: #{sep_up_forward.1} parent=0 // pred_check_branch
    %32 = sbr.rel (0) target = $region33
  $region32: #{sep_up_forward.1} parent=0 // pred_region
    _
  $region33: #{sep_up_forward.1} parent=0 // pred_fallthru
    _
  // Predicated region
  $region34: #{sep_up_forward.1} parent=0 // pred_check
    _
  $region35: #{sep_up_forward.1} parent=0 // pred_check_branch
    %34 = sbr.rel (0) target = $region37
  $region36: #{sep_up_forward.1} parent=0 // pred_region
    _
  $region37: #{sep_up_forward.1} parent=0 // pred_fallthru
    _
  // Predicated region
  $region38: #{sep_up_forward.1} parent=0 // pred_check
    _
  $region39: #{sep_up_forward.1} parent=0 // pred_check_branch
    %36 = sbr.rel (0) target = $region41
  $region40: #{sep_up_forward.1} parent=0 // pred_region
    _
  $region41: #{sep_up_forward.1} parent=0 // pred_fallthru
    _
  // Predicated region
  $region42: #{sep_up_forward.1} parent=0 // pred_check
    _
  $region43: #{sep_up_forward.1} parent=0 // pred_check_branch
    %38 = sbr.rel (0) target = $region45
  $region44: #{sep_up_forward.1} parent=0 // pred_region
    _
  $region45: #{sep_up_forward.1} parent=0 // pred_fallthru
    _
  // Predicated region
  $region46: #{sep_up_forward.1} parent=0 // pred_check
    _
  $region47: #{sep_up_forward.1} parent=0 // pred_check_branch
    %40 = sbr.rel (0) target = $region49
  $region48: #{sep_up_forward.1} parent=0 // pred_region
    _
  $region49: #{sep_up_forward.1} parent=0 // pred_fallthru
    _
  %v42 = vld [vmem:[%s1] sm:$0xff]
  %v43 = vld [vmem:[%s1 + $0x8] sm:$0xff]
  %v44 = vld [vmem:[%s3] sm:$0xff]
  %v45 = vld [vmem:[%s3 + $0x8] sm:$0xff]
  %v46 = vld [vmem:[%s3 + $0x10] sm:$0xff]
  %v47 = vld [vmem:[%s3 + $0x18] sm:$0xff]
  %vm48 = vcmask 261120
  %v50 = vsel %vm48, %v42, 0
  %v53 = vsel %vm48, %v43, 0
  %55 = vmatprep.subr.mxu0 0.0
  %56 = vmatpush1.msra.mxu0 %v44
  %57 = vmatprep.subr.mxu0 0.0
  %58 = vmatpush1.msra.mxu0 %v45
  %59 = vmatprep.subr.mxu0 0.0
  %60 = vmatpush1.msra.mxu0 %v46
  %61 = vmatprep.subr.mxu0 0.0
  %62 = vmatpush1.msra.mxu0 %v47
  %63 = vmatprep.subr.mxu0 0.0
  %64 = vmatpush1.msra.mxu0 0.0
  %65 = vmatprep.subr.mxu0 0.0
  %66 = vmatpush1.msra.mxu0 0.0
  %67 = vmatprep.subr.mxu0 0.0
  %68 = vmatpush1.msra.mxu0 0.0
  %69 = vmatprep.subr.mxu0 0.0
  %70 = vmatpush1.msra.mxu0 0.0
  %71 = vmatprep.subr.mxu0 0.0
  %72 = vmatpush1.msra.mxu0 0.0
  %73 = vmatprep.subr.mxu0 0.0
  %74 = vmatpush1.msra.mxu0 0.0
  %75 = vmatprep.subr.mxu0 0.0
  %76 = vmatpush1.msra.mxu0 0.0
  %77 = vmatprep.subr.mxu0 0.0
  %78 = vmatpush1.msra.mxu0 0.0
  %79 = vmatprep.subr.mxu0 0.0
  %80 = vmatpush1.msra.mxu0 0.0
  %81 = vmatprep.subr.mxu0 0.0
  %82 = vmatpush1.msra.mxu0 0.0
  %83 = vmatprep.subr.mxu0 0.0
  %84 = vmatpush1.msra.mxu0 0.0
  %85 = vmatprep.subr.mxu0 0.0
  %86 = vmatpush1.msra.mxu0 0.0
  %87 = vmatprep.subr.mxu0 0.0
  %88 = vmatpush1.msra.mxu0 0.0
  %89 = vmatprep.subr.mxu0 0.0
  %90 = vmatpush1.msra.mxu0 0.0
  %91 = vmatprep.subr.mxu0 0.0
  %92 = vmatpush1.msra.mxu0 0.0
  %93 = vmatprep.subr.mxu0 0.0
  %94 = vmatpush1.msra.mxu0 0.0
  %95 = vmatprep.subr.mxu0 0.0
  %96 = vmatpush1.msra.mxu0 0.0
  %97 = vmatprep.subr.mxu0 0.0
  %98 = vmatpush1.msra.mxu0 0.0
  %99 = vmatprep.subr.mxu0 0.0
  %100 = vmatpush1.msra.mxu0 0.0
  %101 = vmatprep.subr.mxu0 0.0
  %102 = vmatpush1.msra.mxu0 0.0
  %103 = vmatprep.subr.mxu0 0.0
  %104 = vmatpush1.msra.mxu0 0.0
  %105 = vmatprep.subr.mxu0 0.0
  %106 = vmatpush1.msra.mxu0 0.0
  %107 = vmatprep.subr.mxu0 0.0
  %108 = vmatpush1.msra.mxu0 0.0
  %109 = vmatprep.subr.mxu0 0.0
  %110 = vmatpush1.msra.mxu0 0.0
  %111 = vmatprep.subr.mxu0 0.0
  %112 = vmatpush1.msra.mxu0 0.0
  %113 = vmatprep.subr.mxu0 0.0
  %114 = vmatpush1.msra.mxu0 0.0
  %115 = vmatprep.subr.mxu0 0.0
  %116 = vmatpush1.msra.mxu0 0.0
  %117 = vmatprep.subr.mxu0 0.0
  %118 = vmatpush1.msra.mxu0 0.0
  %119 = vmatprep.mubr.f32.mxu0 0.0
  %120 = vmatmul.mubr.f32.gmra.mrb[0].mxu0 %v50
  %v121 = vpop.f32.mrb[0].mxu0
  %v122 = vadd.f32 0.0, %v121
  %v123 = vpop.f32.mrb[0].mxu0
  %124 = vmatprep.mubr.f32.mxu0 0.0
  %125 = vmatmul.mubr.f32.gmra.mrb[0].mxu0 %v53
  %v126 = vpop.f32.mrb[0].mxu0
  %v127 = vadd.f32 0.0, %v126
  %v128 = vpop.f32.mrb[0].mxu0
  %129 = vdwg.mxu0
  %v130 = vld [vmem:[%s2] sm:$0xff]
  %v131 = vld [vmem:[%s2 + $0x8] sm:$0xff]
  %v132 = vld [vmem:[%s2 + $0x10] sm:$0xff]
  %v133 = vld [vmem:[%s2 + $0x18] sm:$0xff]
  %vm134 = vcmask 130048
  %v136 = vsel %vm134, %v130, 0
  %v139 = vsel %vm134, %v131, 0
  %v142 = vsel %vm134, %v132, 0
  %v145 = vsel %vm134, %v133, 0
  %147 = vmatprep.subr.mxu0 0.0
  %148 = vmatpush1.msra.mxu0 %v122
  %149 = vmatprep.subr.mxu0 0.0
  %150 = vmatpush1.msra.mxu0 %v127
  %151 = vmatprep.subr.mxu0 0.0
  %152 = vmatpush1.msra.mxu0 0.0
  %153 = vmatprep.subr.mxu0 0.0
  %154 = vmatpush1.msra.mxu0 0.0
  %155 = vmatprep.subr.mxu0 0.0
  %156 = vmatpush1.msra.mxu0 0.0
  %157 = vmatprep.subr.mxu0 0.0
  %158 = vmatpush1.msra.mxu0 0.0
  %159 = vmatprep.subr.mxu0 0.0
  %160 = vmatpush1.msra.mxu0 0.0
  %161 = vmatprep.subr.mxu0 0.0
  %162 = vmatpush1.msra.mxu0 0.0
  %163 = vmatprep.subr.mxu0 0.0
  %164 = vmatpush1.msra.mxu0 0.0
  %165 = vmatprep.subr.mxu0 0.0
  %166 = vmatpush1.msra.mxu0 0.0
  %167 = vmatprep.subr.mxu0 0.0
  %168 = vmatpush1.msra.mxu0 0.0
  %169 = vmatprep.subr.mxu0 0.0
  %170 = vmatpush1.msra.mxu0 0.0
  %171 = vmatprep.subr.mxu0 0.0
  %172 = vmatpush1.msra.mxu0 0.0
  %173 = vmatprep.subr.mxu0 0.0
  %174 = vmatpush1.msra.mxu0 0.0
  %175 = vmatprep.subr.mxu0 0.0
  %176 = vmatpush1.msra.mxu0 0.0
  %177 = vmatprep.subr.mxu0 0.0
  %178 = vmatpush1.msra.mxu0 0.0
  %179 = vmatprep.subr.mxu0 0.0
  %180 = vmatpush1.msra.mxu0 0.0
  %181 = vmatprep.subr.mxu0 0.0
  %182 = vmatpush1.msra.mxu0 0.0
  %183 = vmatprep.subr.mxu0 0.0
  %184 = vmatpush1.msra.mxu0 0.0
  %185 = vmatprep.subr.mxu0 0.0
  %186 = vmatpush1.msra.mxu0 0.0
  %187 = vmatprep.subr.mxu0 0.0
  %188 = vmatpush1.msra.mxu0 0.0
  %189 = vmatprep.subr.mxu0 0.0
  %190 = vmatpush1.msra.mxu0 0.0
  %191 = vmatprep.subr.mxu0 0.0
  %192 = vmatpush1.msra.mxu0 0.0
  %193 = vmatprep.subr.mxu0 0.0
  %194 = vmatpush1.msra.mxu0 0.0
  %195 = vmatprep.subr.mxu0 0.0
  %196 = vmatpush1.msra.mxu0 0.0
  %197 = vmatprep.subr.mxu0 0.0
  %198 = vmatpush1.msra.mxu0 0.0
  %199 = vmatprep.subr.mxu0 0.0
  %200 = vmatpush1.msra.mxu0 0.0
  %201 = vmatprep.subr.mxu0 0.0
  %202 = vmatpush1.msra.mxu0 0.0
  %203 = vmatprep.subr.mxu0 0.0
  %204 = vmatpush1.msra.mxu0 0.0
  %205 = vmatprep.subr.mxu0 0.0
  %206 = vmatpush1.msra.mxu0 0.0
  %207 = vmatprep.subr.mxu0 0.0
  %208 = vmatpush1.msra.mxu0 0.0
  %209 = vmatprep.subr.mxu0 0.0
  %210 = vmatpush1.msra.mxu0 0.0
  %211 = vmatprep.mubr.f32.mxu0 0.0
  %212 = vmatmul.mubr.f32.gmra.mrb[0].mxu0 %v136
  %v213 = vpop.f32.mrb[0].mxu0
  %v214 = vadd.f32 0.0, %v213
  %v215 = vpop.f32.mrb[0].mxu0
  %216 = vmatprep.mubr.f32.mxu0 0.0
  %217 = vmatmul.mubr.f32.gmra.mrb[0].mxu0 %v139
  %v218 = vpop.f32.mrb[0].mxu0
  %v219 = vadd.f32 0.0, %v218
  %v220 = vpop.f32.mrb[0].mxu0
  %221 = vmatprep.mubr.f32.mxu0 0.0
  %222 = vmatmul.mubr.f32.gmra.mrb[0].mxu0 %v142
  %v223 = vpop.f32.mrb[0].mxu0
  %v224 = vadd.f32 0.0, %v223
  %v225 = vpop.f32.mrb[0].mxu0
  %226 = vmatprep.mubr.f32.mxu0 0.0
  %227 = vmatmul.mubr.f32.gmra.mrb[0].mxu0 %v145
  %v228 = vpop.f32.mrb[0].mxu0
  %v229 = vadd.f32 0.0, %v228
  %v230 = vpop.f32.mrb[0].mxu0
  %231 = vdwg.mxu0
  %v232 = vld [vmem:[%s0] sm:$0xff]
  %v233 = vld [vmem:[%s0 + $0x8] sm:$0xff]
  %v234 = vld [vmem:[%s0 + $0x10] sm:$0xff]
  %v235 = vld [vmem:[%s0 + $0x18] sm:$0xff]
  %240 = vrot.lane.b32.xlu0 %v214, 64
  %v241 = vpop.permute.xlu0 %240
  %242 = vrot.lane.b32.xlu0 %v219, 64
  %v243 = vpop.permute.xlu0 %242
  %244 = vrot.lane.b32.xlu0 %v224, 64
  %v245 = vpop.permute.xlu0 %244
  %246 = vrot.lane.b32.xlu0 %v229, 64
  %v247 = vpop.permute.xlu0 %246
  %vm252 = vcmask 523264
  %v253 = vsel %vm252, %v232, %v241
  %v254 = vsel %vm252, %v233, %v243
  %v255 = vsel %vm252, %v234, %v245
  %v256 = vsel %vm252, %v235, %v247
  %v257 = vld [vmem:[%s4] sm:$0xff]
  %v258 = vld [vmem:[%s4 + $0x8] sm:$0xff]
  %v259 = vld [vmem:[%s4 + $0x10] sm:$0xff]
  %v260 = vld [vmem:[%s4 + $0x18] sm:$0xff]
  %v261 = vld [vmem:[%s5] sm:$0xff]
  %v262 = vld [vmem:[%s5 + $0x8] sm:$0xff]
  %v263 = vld [vmem:[%s5 + $0x10] sm:$0xff]
  %v264 = vld [vmem:[%s5 + $0x18] sm:$0xff]
  %v265 = vrot.slane %v253, 7
  %v266 = vrot.slane %v254, 7
  %v267 = vrot.slane %v255, 7
  %v268 = vrot.slane %v256, 7
  %v269 = vlaneseq
  %v270 = vshrl.u32 %v269, 7
  %vm271 = vcmp.lt.s32.totalorder %v270, 1
  %v272 = vsel %vm271, %v267, %v268
  %v273 = vsel %vm271, %v266, %v267
  %v274 = vsel %vm271, %v265, %v266
  %v275 = vsel %vm271, %v268, %v265
  %277 = vset.pattern.permute.xlu0 0
  %278 = vperm.xlu0 %277, %v257
  %v279 = vpop.permute.xlu0 %278
  %282 = vset.pattern.permute.xlu0 0
  %283 = vperm.xlu0 %282, %v258
  %v284 = vpop.permute.xlu0 %283
  %287 = vset.pattern.permute.xlu0 0
  %288 = vperm.xlu0 %287, %v259
  %v289 = vpop.permute.xlu0 %288
  %292 = vset.pattern.permute.xlu0 0
  %293 = vperm.xlu0 %292, %v260
  %v294 = vpop.permute.xlu0 %293
  %v296 = vmul.f32 %v275, %v279
  %v297 = vmul.f32 %v274, %v284
  %v298 = vmul.f32 %v273, %v289
  %v299 = vmul.f32 %v272, %v294
  %v300 = vrot.slane %v253, 1
  %v301 = vrot.slane %v254, 1
  %v302 = vrot.slane %v255, 1
  %v303 = vrot.slane %v256, 1
  %vm304 = vcmp.lt.s32.totalorder %v270, 7
  %v305 = vsel %vm304, %v302, %v303
  %v306 = vsel %vm304, %v301, %v302
  %v307 = vsel %vm304, %v300, %v301
  %v308 = vsel %vm304, %v303, %v300
  %310 = vset.pattern.permute.xlu0 0
  %311 = vperm.xlu0 %310, %v261
  %v312 = vpop.permute.xlu0 %311
  %315 = vset.pattern.permute.xlu0 0
  %316 = vperm.xlu0 %315, %v262
  %v317 = vpop.permute.xlu0 %316
  %320 = vset.pattern.permute.xlu0 0
  %321 = vperm.xlu0 %320, %v263
  %v322 = vpop.permute.xlu0 %321
  %325 = vset.pattern.permute.xlu0 0
  %326 = vperm.xlu0 %325, %v264
  %v327 = vpop.permute.xlu0 %326
  %v329 = vmul.f32 %v307, %v312
  %v330 = vmul.f32 %v306, %v317
  %v331 = vmul.f32 %v305, %v322
  %v332 = vmul.f32 %v308, %v327
  %v333 = vpack.c.bf16 %v297, %v296
  %v334 = vpack.c.bf16 %v254, %v253
  %v335 = vpack.c.bf16 %v330, %v329
  %v336 = vpack.c.bf16 %v299, %v298
  %v337 = vpack.c.bf16 %v256, %v255
  %v338 = vpack.c.bf16 %v332, %v331
  %v339 = vld [vmem:[%s6] sm:$0xf]
  %v340 = vld [vmem:[%s6 + $0x4] sm:$0xf]
  %v341 = vld [vmem:[%s6 + $0x8] sm:$0xf]
  %v342 = vld [vmem:[%s6 + $0xc] sm:$0xf]
  %v343 = vld [vmem:[%s6 + $0x10] sm:$0xf]
  %v344 = vld [vmem:[%s6 + $0x14] sm:$0xf]
  %v345 = vld [vmem:[%s6 + $0x18] sm:$0xf]
  %v346 = vld [vmem:[%s6 + $0x1c] sm:$0xf]
  %v347 = vld [vmem:[%s6 + $0x20] sm:$0xf]
  %v348 = vld [vmem:[%s6 + $0x24] sm:$0xf]
  %v349 = vld [vmem:[%s6 + $0x28] sm:$0xf]
  %v350 = vld [vmem:[%s6 + $0x2c] sm:$0xf]
  %v351 = vld [vmem:[%s6 + $0x30] sm:$0xf]
  %v352 = vld [vmem:[%s6 + $0x34] sm:$0xf]
  %v353 = vld [vmem:[%s6 + $0x38] sm:$0xf]
  %v354 = vld [vmem:[%s6 + $0x3c] sm:$0xf]
  %v355 = vld [vmem:[%s6 + $0x40] sm:$0xf]
  %v356 = vld [vmem:[%s6 + $0x44] sm:$0xf]
  %v357 = vld [vmem:[%s6 + $0x48] sm:$0xf]
  %v358 = vld [vmem:[%s6 + $0x4c] sm:$0xf]
  %v359 = vld [vmem:[%s6 + $0x50] sm:$0xf]
  %v360 = vld [vmem:[%s6 + $0x54] sm:$0xf]
  %v361 = vld [vmem:[%s6 + $0x58] sm:$0xf]
  %v362 = vld [vmem:[%s6 + $0x5c] sm:$0xf]
  %v363 = vld [vmem:[%s6 + $0x60] sm:$0xf]
  %v364 = vld [vmem:[%s6 + $0x64] sm:$0xf]
  %v365 = vld [vmem:[%s6 + $0x68] sm:$0xf]
  %v366 = vld [vmem:[%s6 + $0x6c] sm:$0xf]
  %v367 = vld [vmem:[%s6 + $0x70] sm:$0xf]
  %v368 = vld [vmem:[%s6 + $0x74] sm:$0xf]
  %v369 = vld [vmem:[%s6 + $0x78] sm:$0xf]
  %v370 = vld [vmem:[%s6 + $0x7c] sm:$0xf]
  %v371 = vld [vmem:[%s6 + $0x80] sm:$0xf]
  %v372 = vld [vmem:[%s6 + $0x84] sm:$0xf]
  %v373 = vld [vmem:[%s6 + $0x88] sm:$0xf]
  %v374 = vld [vmem:[%s6 + $0x8c] sm:$0xf]
  %v375 = vld [vmem:[%s6 + $0x90] sm:$0xf]
  %v376 = vld [vmem:[%s6 + $0x94] sm:$0xf]
  %v377 = vld [vmem:[%s6 + $0x98] sm:$0xf]
  %v378 = vld [vmem:[%s6 + $0x9c] sm:$0xf]
  %v379 = vld [vmem:[%s6 + $0xa0] sm:$0xf]
  %v380 = vld [vmem:[%s6 + $0xa4] sm:$0xf]
  %v381 = vld [vmem:[%s6 + $0xa8] sm:$0xf]
  %v382 = vld [vmem:[%s6 + $0xac] sm:$0xf]
  %v383 = vld [vmem:[%s6 + $0xb0] sm:$0xf]
  %v384 = vld [vmem:[%s6 + $0xb4] sm:$0xf]
  %v385 = vld [vmem:[%s6 + $0xb8] sm:$0xf]
  %v386 = vld [vmem:[%s6 + $0xbc] sm:$0xf]
  %v435 = vunpack.c.l.b16 %v339
  %v436 = vunpack.c.l.b16 %v340
  %v437 = vunpack.c.l.b16 %v341
  %v438 = vunpack.c.l.b16 %v342
  %v439 = vunpack.c.l.b16 %v343
  %v440 = vunpack.c.l.b16 %v344
  %v441 = vunpack.c.l.b16 %v345
  %v442 = vunpack.c.l.b16 %v346
  %v443 = vunpack.c.l.b16 %v347
  %v444 = vunpack.c.l.b16 %v348
  %v445 = vunpack.c.l.b16 %v349
  %v446 = vunpack.c.l.b16 %v350
  %v447 = vunpack.c.l.b16 %v351
  %v448 = vunpack.c.l.b16 %v352
  %v449 = vunpack.c.l.b16 %v353
  %v450 = vunpack.c.l.b16 %v354
  %v451 = vunpack.c.l.b16 %v355
  %v452 = vunpack.c.l.b16 %v356
  %v453 = vunpack.c.l.b16 %v357
  %v454 = vunpack.c.l.b16 %v358
  %v455 = vunpack.c.l.b16 %v359
  %v456 = vunpack.c.l.b16 %v360
  %v457 = vunpack.c.l.b16 %v361
  %v458 = vunpack.c.l.b16 %v362
  %v459 = vunpack.c.l.b16 %v363
  %v460 = vunpack.c.l.b16 %v364
  %v461 = vunpack.c.l.b16 %v365
  %v462 = vunpack.c.l.b16 %v366
  %v463 = vunpack.c.l.b16 %v367
  %v464 = vunpack.c.l.b16 %v368
  %v465 = vunpack.c.l.b16 %v369
  %v466 = vunpack.c.l.b16 %v370
  %v467 = vunpack.c.l.b16 %v371
  %v468 = vunpack.c.l.b16 %v372
  %v469 = vunpack.c.l.b16 %v373
  %v470 = vunpack.c.l.b16 %v374
  %v471 = vunpack.c.l.b16 %v375
  %v472 = vunpack.c.l.b16 %v376
  %v473 = vunpack.c.l.b16 %v377
  %v474 = vunpack.c.l.b16 %v378
  %v475 = vunpack.c.l.b16 %v379
  %v476 = vunpack.c.l.b16 %v380
  %v477 = vunpack.c.l.b16 %v381
  %v478 = vunpack.c.l.b16 %v382
  %v479 = vunpack.c.l.b16 %v383
  %v480 = vunpack.c.l.b16 %v384
  %v481 = vunpack.c.l.b16 %v385
  %v482 = vunpack.c.l.b16 %v386
  %v483 = vpack.c.b16 %v436, %v435
  %v484 = vpack.c.b16 %v438, %v437
  %v485 = vpack.c.b16 %v440, %v439
  %v486 = vpack.c.b16 %v442, %v441
  %v487 = vpack.c.b16 %v444, %v443
  %v488 = vpack.c.b16 %v446, %v445
  %v489 = vpack.c.b16 %v448, %v447
  %v490 = vpack.c.b16 %v450, %v449
  %v491 = vpack.c.b16 %v452, %v451
  %v492 = vpack.c.b16 %v454, %v453
  %v493 = vpack.c.b16 %v456, %v455
  %v494 = vpack.c.b16 %v458, %v457
  %v495 = vpack.c.b16 %v460, %v459
  %v496 = vpack.c.b16 %v462, %v461
  %v497 = vpack.c.b16 %v464, %v463
  %v498 = vpack.c.b16 %v466, %v465
  %v499 = vpack.c.b16 %v468, %v467
  %v500 = vpack.c.b16 %v470, %v469
  %v501 = vpack.c.b16 %v472, %v471
  %v502 = vpack.c.b16 %v474, %v473
  %v503 = vpack.c.b16 %v476, %v475
  %v504 = vpack.c.b16 %v478, %v477
  %v505 = vpack.c.b16 %v480, %v479
  %v506 = vpack.c.b16 %v482, %v481
  %531 = vmatprep.subr.bf16.mxu0 0
  %532 = vmatpush1.bf16.msra.mxu0 %v483
  %533 = vmatprep.subr.bf16.mxu0 0
  %534 = vmatpush1.bf16.msra.mxu0 %v484
  %535 = vmatprep.subr.bf16.mxu0 0
  %536 = vmatpush1.bf16.msra.mxu0 %v485
  %537 = vmatprep.subr.bf16.mxu0 0
  %538 = vmatpush1.bf16.msra.mxu0 %v486
  %539 = vmatprep.subr.bf16.mxu0 0
  %540 = vmatpush1.bf16.msra.mxu0 %v487
  %541 = vmatprep.subr.bf16.mxu0 0
  %542 = vmatpush1.bf16.msra.mxu0 %v488
  %543 = vmatprep.subr.bf16.mxu0 0
  %544 = vmatpush1.bf16.msra.mxu0 %v489
  %545 = vmatprep.subr.bf16.mxu0 0
  %546 = vmatpush1.bf16.msra.mxu0 %v490
  %547 = vmatprep.subr.bf16.mxu0 0
  %548 = vmatpush1.bf16.msra.mxu0 %v491
  %549 = vmatprep.subr.bf16.mxu0 0
  %550 = vmatpush1.bf16.msra.mxu0 %v492
  %551 = vmatprep.subr.bf16.mxu0 0
  %552 = vmatpush1.bf16.msra.mxu0 %v493
  %553 = vmatprep.subr.bf16.mxu0 0
  %554 = vmatpush1.bf16.msra.mxu0 %v494
  %555 = vmatprep.subr.bf16.mxu0 0
  %556 = vmatpush1.bf16.msra.mxu0 %v495
  %557 = vmatprep.subr.bf16.mxu0 0
  %558 = vmatpush1.bf16.msra.mxu0 %v496
  %559 = vmatprep.subr.bf16.mxu0 0
  %560 = vmatpush1.bf16.msra.mxu0 %v497
  %561 = vmatprep.subr.bf16.mxu0 0
  %562 = vmatpush1.bf16.msra.mxu0 %v498
  %563 = vmatprep.mubr.bf16.mxu0 %v334
  %564 = vmatmul.mubr.bf16.gmra.mrb[0].mxu0 %v333
  %v565 = vpop.f32.mrb[0].mxu0
  %v566 = vadd.f32 0.0, %v565
  %v567 = vpop.f32.mrb[0].mxu0
  %v568 = vpop.f32.mrb[0].mxu0
  %v569 = vadd.f32 0.0, %v568
  %v570 = vpop.f32.mrb[0].mxu0
  %571 = vmatprep.mubr.bf16.mxu0 %v337
  %572 = vmatmul.mubr.bf16.gmra.mrb[0].mxu0 %v336
  %v573 = vpop.f32.mrb[0].mxu0
  %v574 = vadd.f32 0.0, %v573
  %v575 = vpop.f32.mrb[0].mxu0
  %v576 = vpop.f32.mrb[0].mxu0
  %v577 = vadd.f32 0.0, %v576
  %v578 = vpop.f32.mrb[0].mxu0
  %579 = vdwg.mxu0
  %580 = vmatprep.subr.bf16.mxu0 0
  %581 = vmatpush1.bf16.msra.mxu0 %v499
  %582 = vmatprep.subr.bf16.mxu0 0
  %583 = vmatpush1.bf16.msra.mxu0 %v500
  %584 = vmatprep.subr.bf16.mxu0 0
  %585 = vmatpush1.bf16.msra.mxu0 %v501
  %586 = vmatprep.subr.bf16.mxu0 0
  %587 = vmatpush1.bf16.msra.mxu0 %v502
  %588 = vmatprep.subr.bf16.mxu0 0
  %589 = vmatpush1.bf16.msra.mxu0 %v503
  %590 = vmatprep.subr.bf16.mxu0 0
  %591 = vmatpush1.bf16.msra.mxu0 %v504
  %592 = vmatprep.subr.bf16.mxu0 0
  %593 = vmatpush1.bf16.msra.mxu0 %v505
  %594 = vmatprep.subr.bf16.mxu0 0
  %595 = vmatpush1.bf16.msra.mxu0 %v506
  %596 = vmatprep.subr.bf16.mxu0 0
  %597 = vmatpush1.bf16.msra.mxu0 0
  %598 = vmatprep.subr.bf16.mxu0 0
  %599 = vmatpush1.bf16.msra.mxu0 0
  %600 = vmatprep.subr.bf16.mxu0 0
  %601 = vmatpush1.bf16.msra.mxu0 0
  %602 = vmatprep.subr.bf16.mxu0 0
  %603 = vmatpush1.bf16.msra.mxu0 0
  %604 = vmatprep.subr.bf16.mxu0 0
  %605 = vmatpush1.bf16.msra.mxu0 0
  %606 = vmatprep.subr.bf16.mxu0 0
  %607 = vmatpush1.bf16.msra.mxu0 0
  %608 = vmatprep.subr.bf16.mxu0 0
  %609 = vmatpush1.bf16.msra.mxu0 0
  %610 = vmatprep.subr.bf16.mxu0 0
  %611 = vmatpush1.bf16.msra.mxu0 0
  %612 = vmatprep.mubr.bf16.mxu0 0
  %613 = vmatmul.mubr.bf16.gmra.mrb[0].mxu0 %v335
  %v614 = vpop.f32.mrb[0].mxu0
  %v615 = vadd.f32 %v566, %v614
  %v616 = vpop.f32.mrb[0].mxu0
  %v617 = vpop.f32.mrb[0].mxu0
  %v618 = vadd.f32 %v569, %v617
  %v619 = vpop.f32.mrb[0].mxu0
  %620 = vmatprep.mubr.bf16.mxu0 0
  %621 = vmatmul.mubr.bf16.gmra.mrb[0].mxu0 %v338
  %v622 = vpop.f32.mrb[0].mxu0
  %v623 = vadd.f32 %v574, %v622
  %v624 = vpop.f32.mrb[0].mxu0
  %v625 = vpop.f32.mrb[0].mxu0
  %v626 = vadd.f32 %v577, %v625
  %v627 = vpop.f32.mrb[0].mxu0
  %628 = vdwg.mxu0
  %v629 = vld [vmem:[%s7] sm:$0x1]
  %v631 = vlaneseq
  %v632 = vshrl.u32 %v631, 7
  %v633 = vsub.s32 0, %v632
  %v634 = vrot.slane %v629, %v633
  %v636 = vmul.f32 %v615, %v634
  %v637 = vmul.f32 %v618, %v634
  %v638 = vmul.f32 %v623, %v634
  %v639 = vmul.f32 %v626, %v634
  %v640 = vld [vmem:[%s8] sm:$0x1]
  %v642 = vlaneseq
  %v643 = vshrl.u32 %v642, 7
  %v644 = vsub.s32 0, %v643
  %v645 = vrot.slane %v640, %v644
  %v647 = vadd.f32 %v636, %v645
  %v648 = vadd.f32 %v637, %v645
  %v649 = vadd.f32 %v638, %v645
  %v650 = vadd.f32 %v639, %v645
  %v651 = vmax.f32 %v647, 0.0
  %v652 = vmax.f32 %v648, 0.0
  %v653 = vmax.f32 %v649, 0.0
  %v654 = vmax.f32 %v650, 0.0
  %v655 = vrot.slane %v651, 7
  %v656 = vrot.slane %v652, 7
  %v657 = vrot.slane %v653, 7
  %v658 = vrot.slane %v654, 7
  %v659 = vsel %vm271, %v657, %v658
  %v660 = vsel %vm271, %v656, %v657
  %v661 = vsel %vm271, %v655, %v656
  %v662 = vsel %vm271, %v658, %v655
  %v663 = vmul.f32 %v662, %v279
  %v664 = vmul.f32 %v661, %v284
  %v665 = vmul.f32 %v660, %v289
  %v666 = vmul.f32 %v659, %v294
  %v667 = vrot.slane %v651, 1
  %v668 = vrot.slane %v652, 1
  %v669 = vrot.slane %v653, 1
  %v670 = vrot.slane %v654, 1
  %v671 = vsel %vm304, %v669, %v670
  %v672 = vsel %vm304, %v668, %v669
  %v673 = vsel %vm304, %v667, %v668
  %v674 = vsel %vm304, %v670, %v667
  %v675 = vmul.f32 %v673, %v312
  %v676 = vmul.f32 %v672, %v317
  %v677 = vmul.f32 %v671, %v322
  %v678 = vmul.f32 %v674, %v327
  %683 = vrot.lane.b32.xlu0 %v651, 64
  %v684 = vpop.permute.xlu0 %683
  %685 = vrot.lane.b32.xlu0 %v652, 64
  %v686 = vpop.permute.xlu0 %685
  %687 = vrot.lane.b32.xlu0 %v653, 64
  %v688 = vpop.permute.xlu0 %687
  %689 = vrot.lane.b32.xlu0 %v654, 64
  %v690 = vpop.permute.xlu0 %689
  %v695 = vsel %vm252, %v663, %v684
  %v696 = vsel %vm252, %v664, %v686
  %v697 = vsel %vm252, %v665, %v688
  %v698 = vsel %vm252, %v666, %v690
  %v699 = vpack.c.bf16 %v696, %v695
  %v700 = vpack.c.bf16 %v676, %v675
  %v701 = vpack.c.bf16 %v698, %v697
  %v702 = vpack.c.bf16 %v678, %v677
  %v703 = vld [vmem:[%s9] sm:$0xf]
  %v704 = vld [vmem:[%s9 + $0x4] sm:$0xf]
  %v705 = vld [vmem:[%s9 + $0x8] sm:$0xf]
  %v706 = vld [vmem:[%s9 + $0xc] sm:$0xf]
  %v707 = vld [vmem:[%s9 + $0x10] sm:$0xf]
  %v708 = vld [vmem:[%s9 + $0x14] sm:$0xf]
  %v709 = vld [vmem:[%s9 + $0x18] sm:$0xf]
  %v710 = vld [vmem:[%s9 + $0x1c] sm:$0xf]
  %v711 = vld [vmem:[%s9 + $0x20] sm:$0xf]
  %v712 = vld [vmem:[%s9 + $0x24] sm:$0xf]
  %v713 = vld [vmem:[%s9 + $0x28] sm:$0xf]
  %v714 = vld [vmem:[%s9 + $0x2c] sm:$0xf]
  %v715 = vld [vmem:[%s9 + $0x30] sm:$0xf]
  %v716 = vld [vmem:[%s9 + $0x34] sm:$0xf]
  %v717 = vld [vmem:[%s9 + $0x38] sm:$0xf]
  %v718 = vld [vmem:[%s9 + $0x3c] sm:$0xf]
  %v719 = vld [vmem:[%s9 + $0x40] sm:$0xf]
  %v720 = vld [vmem:[%s9 + $0x44] sm:$0xf]
  %v721 = vld [vmem:[%s9 + $0x48] sm:$0xf]
  %v722 = vld [vmem:[%s9 + $0x4c] sm:$0xf]
  %v723 = vld [vmem:[%s9 + $0x50] sm:$0xf]
  %v724 = vld [vmem:[%s9 + $0x54] sm:$0xf]
  %v725 = vld [vmem:[%s9 + $0x58] sm:$0xf]
  %v726 = vld [vmem:[%s9 + $0x5c] sm:$0xf]
  %v751 = vunpack.c.l.b16 %v703
  %v752 = vunpack.c.l.b16 %v704
  %v753 = vunpack.c.l.b16 %v705
  %v754 = vunpack.c.l.b16 %v706
  %v755 = vunpack.c.l.b16 %v707
  %v756 = vunpack.c.l.b16 %v708
  %v757 = vunpack.c.l.b16 %v709
  %v758 = vunpack.c.l.b16 %v710
  %v759 = vunpack.c.l.b16 %v711
  %v760 = vunpack.c.l.b16 %v712
  %v761 = vunpack.c.l.b16 %v713
  %v762 = vunpack.c.l.b16 %v714
  %v763 = vunpack.c.l.b16 %v715
  %v764 = vunpack.c.l.b16 %v716
  %v765 = vunpack.c.l.b16 %v717
  %v766 = vunpack.c.l.b16 %v718
  %v767 = vunpack.c.l.b16 %v719
  %v768 = vunpack.c.l.b16 %v720
  %v769 = vunpack.c.l.b16 %v721
  %v770 = vunpack.c.l.b16 %v722
  %v771 = vunpack.c.l.b16 %v723
  %v772 = vunpack.c.l.b16 %v724
  %v773 = vunpack.c.l.b16 %v725
  %v774 = vunpack.c.l.b16 %v726
  %v775 = vpack.c.b16 %v752, %v751
  %v776 = vpack.c.b16 %v754, %v753
  %v777 = vpack.c.b16 %v756, %v755
  %v778 = vpack.c.b16 %v758, %v757
  %v779 = vpack.c.b16 %v760, %v759
  %v780 = vpack.c.b16 %v762, %v761
  %v781 = vpack.c.b16 %v764, %v763
  %v782 = vpack.c.b16 %v766, %v765
  %v783 = vpack.c.b16 %v768, %v767
  %v784 = vpack.c.b16 %v770, %v769
  %v785 = vpack.c.b16 %v772, %v771
  %v786 = vpack.c.b16 %v774, %v773
  %v800 = vsel %vm252, %v700, 0
  %v803 = vsel %vm252, %v702, 0
  %805 = vmatprep.subr.bf16.mxu0 0
  %806 = vmatpush1.bf16.msra.mxu0 %v775
  %807 = vmatprep.subr.bf16.mxu0 0
  %808 = vmatpush1.bf16.msra.mxu0 %v776
  %809 = vmatprep.subr.bf16.mxu0 0
  %810 = vmatpush1.bf16.msra.mxu0 %v777
  %811 = vmatprep.subr.bf16.mxu0 0
  %812 = vmatpush1.bf16.msra.mxu0 %v778
  %813 = vmatprep.subr.bf16.mxu0 0
  %814 = vmatpush1.bf16.msra.mxu0 %v779
  %815 = vmatprep.subr.bf16.mxu0 0
  %816 = vmatpush1.bf16.msra.mxu0 %v780
  %817 = vmatprep.subr.bf16.mxu0 0
  %818 = vmatpush1.bf16.msra.mxu0 %v781
  %819 = vmatprep.subr.bf16.mxu0 0
  %820 = vmatpush1.bf16.msra.mxu0 %v782
  %821 = vmatprep.subr.bf16.mxu0 0
  %822 = vmatpush1.bf16.msra.mxu0 %v783
  %823 = vmatprep.subr.bf16.mxu0 0
  %824 = vmatpush1.bf16.msra.mxu0 %v784
  %825 = vmatprep.subr.bf16.mxu0 0
  %826 = vmatpush1.bf16.msra.mxu0 %v785
  %827 = vmatprep.subr.bf16.mxu0 0
  %828 = vmatpush1.bf16.msra.mxu0 %v786
  %829 = vmatprep.subr.bf16.mxu0 0
  %830 = vmatpush1.bf16.msra.mxu0 0
  %831 = vmatprep.subr.bf16.mxu0 0
  %832 = vmatpush1.bf16.msra.mxu0 0
  %833 = vmatprep.subr.bf16.mxu0 0
  %834 = vmatpush1.bf16.msra.mxu0 0
  %835 = vmatprep.subr.bf16.mxu0 0
  %836 = vmatpush1.bf16.msra.mxu0 0
  %837 = vmatprep.mubr.bf16.mxu0 %v800
  %838 = vmatmul.mubr.bf16.gmra.mrb[0].mxu0 %v699
  %v839 = vpop.f32.mrb[0].mxu0
  %v840 = vadd.f32 0.0, %v839
  %v841 = vpop.f32.mrb[0].mxu0
  %v842 = vpop.f32.mrb[0].mxu0
  %v843 = vadd.f32 0.0, %v842
  %v844 = vpop.f32.mrb[0].mxu0
  %845 = vmatprep.mubr.bf16.mxu0 %v803
  %846 = vmatmul.mubr.bf16.gmra.mrb[0].mxu0 %v701
  %v847 = vpop.f32.mrb[0].mxu0
  %v848 = vadd.f32 0.0, %v847
  %v849 = vpop.f32.mrb[0].mxu0
  %v850 = vpop.f32.mrb[0].mxu0
  %v851 = vadd.f32 0.0, %v850
  %v852 = vpop.f32.mrb[0].mxu0
  %853 = vdwg.mxu0
  %v854 = vld [vmem:[%s10] sm:$0x1]
  %v856 = vlaneseq
  %v857 = vshrl.u32 %v856, 7
  %v858 = vsub.s32 0, %v857
  %v859 = vrot.slane %v854, %v858
  %v861 = vmul.f32 %v840, %v859
  %v862 = vmul.f32 %v843, %v859
  %v863 = vmul.f32 %v848, %v859
  %v864 = vmul.f32 %v851, %v859
  %v865 = vld [vmem:[%s11] sm:$0x1]
  %v867 = vlaneseq
  %v868 = vshrl.u32 %v867, 7
  %v869 = vsub.s32 0, %v868
  %v870 = vrot.slane %v865, %v869
  %v872 = vadd.f32 %v861, %v870
  %v873 = vadd.f32 %v862, %v870
  %v874 = vadd.f32 %v863, %v870
  %v875 = vadd.f32 %v864, %v870
  %v876 = vmax.f32 %v872, 0.0
  %v877 = vmax.f32 %v873, 0.0
  %v878 = vmax.f32 %v874, 0.0
  %v879 = vmax.f32 %v875, 0.0
  %880 = vst [vmem:[%s12] sm:$0xff] %v876
  %881 = vst [vmem:[%s12 + $0x8] sm:$0xff] %v877
  %882 = vst [vmem:[%s12 + $0x10] sm:$0xff] %v878
  %883 = vst [vmem:[%s12 + $0x18] sm:$0xff] %v879
  // Predicated region
  $region50: #{sep_up_forward.1} parent=0 // pred_check
    _
  $region51: #{sep_up_forward.1} parent=0 // pred_check_branch
    %885 = sbr.rel (0) target = $region53
  $region52: #{sep_up_forward.1} parent=0 // pred_region
    _
  $region53: #{sep_up_forward.1} parent=0 // pred_fallthru
    _
  // Predicated region
  $region54: #{sep_up_forward.1} parent=0 // pred_check
    _
  $region55: #{sep_up_forward.1} parent=0 // pred_check_branch
    %887 = sbr.rel (0) target = $region57
  $region56: #{sep_up_forward.1} parent=0 // pred_region
    _
  $region57: #{sep_up_forward.1} parent=0 // pred_fallthru
    _

</llo_original>
